<compile_context>
chip_gen: v7x
topology: tpu7x:2x2x1
jax: 0.10.0
libtpu: 0.0.40
codegen_flags: <defaults>
</compile_context>

<pallas_src>
import functools

import jax
import jax.numpy as jnp
from jax import lax
from jax.experimental import pallas as pl
from jax.experimental.pallas import tpu as pltpu


# ----------------------------- VMEM budget --------------------------------- #

def _vmem_limit_bytes():
    # v5e/v6e have 128 MiB of VMEM per core, v7x only 64 MiB: budget ~75% of whatever this chip
    # has, with a conservative fallback if the query is unavailable.
    try:
        cap = int(pltpu.get_tpu_info().vmem_capacity_bytes)
    except Exception:  # pragma: no cover - conservative fallback
        cap = 64 * 1024 * 1024
    return min((cap * 3) // 4, 100 * 1024 * 1024)


_VMEM_LIMIT = _vmem_limit_bytes()


# ------------------------------ fused kernel ------------------------------- #

def _fused_res_block_kernel(x_ref, w1_ref, b1_ref, w2_ref, b2_ref, colpos_ref,
                            o_ref, *, row_w):
    """conv1x1+BN+LReLU -> conv3x3+BN+LReLU -> +x for a block of whole images.

    Everything is channels-first (the NCHW memory layout): feature maps are (channels, H*W)
    2-D tiles with the flattened spatial axis on the 128-wide lane dimension, so no transposes
    are needed anywhere.  Both convolutions are single MXU matmuls; the 3x3 contracts over an
    in-VMEM im2col that never touches HBM.
    """
    nb, c2, m = x_ref.shape                 # images per block, 2C, H*W
    c = w1_ref.shape[0]                     # conv1 output channels, padded to a multiple of 8
    w = row_w                               # image width (lanes per spatial row)
    colpos = colpos_ref[...]                # (1, m) int32: x position within each row

    w1 = w1_ref[...]                        # (Cp, 2C)   bf16, BN scale folded
    w2 = w2_ref[...]                        # (2C, 9*Cp) bf16, BN scale folded
    b1 = b1_ref[...]                        # (Cp, 1)    f32
    b2 = b2_ref[...]                        # (2C, 1)    f32

    for b in range(nb):                     # small static unroll over the images in this block
        x = x_ref[b]                        # (2C, m) f32 -- also the exact residual

        # ---- stage 1: 1x1 conv + BN + LeakyReLU (one MXU matmul, f32 accumulate) ----
        y1 = jnp.dot(w1, x.astype(jnp.bfloat16), preferred_element_type=jnp.float32)
        y1 = y1 + b1
        y1 = jnp.maximum(y1, 0.1 * y1)      # LeakyReLU(0.1): mul + max only
        h = y1.astype(jnp.bfloat16)         # (Cp, m) conv2 input

        # ---- stage 2: 3x3 SAME conv as ONE matmul against an in-VMEM im2col ----
        # Horizontal taps: shift by one lane, zero the left/right image edge with a select.
        zc = jnp.zeros((c, 1), jnp.bfloat16)
        hl = jnp.concatenate([zc, h[:, : m - 1]], axis=1)      # reads column x-1
        hl = jnp.where(colpos == 0, 0.0, hl)
        hr = jnp.concatenate([h[:, 1:], zc], axis=1)           # reads column x+1
        hr = jnp.where(colpos == w - 1, 0.0, hr)

        trio = jnp.concatenate([hl.reshape(1, c, m),
                                h.reshape(1, c, m),
                                hr.reshape(1, c, m)], axis=0)  # (3, Cp, m): kw = 0,1,2
        # Vertical taps: shift by one image row (W lanes); the zero fill IS the top/bottom pad.
        zr = jnp.zeros((3, c, w), jnp.bfloat16)
        up = jnp.concatenate([zr, trio[:, :, : m - w]], axis=2)   # reads row t-1 (kh = 0)
        dn = jnp.concatenate([trio[:, :, w:], zr], axis=2)        # reads row t+1 (kh = 2)
        im2col = jnp.concatenate([up, trio, dn], axis=0).reshape(9 * c, m)   # (9*Cp, m) bf16

        y2 = jnp.dot(w2, im2col, preferred_element_type=jnp.float32)         # (2C, m) f32
        y2 = y2 + b2
        y2 = jnp.maximum(y2, 0.1 * y2)

        # ---- residual add in f32 against the exact input; store stays in NCHW layout ----
        o_ref[b] = (y2 + x).astype(o_ref.dtype)


# ------------------------------ glue / wrapper ----------------------------- #

def _fold_bn(gamma, beta, mean, var, eps=1e-5):
    scale = gamma / jnp.sqrt(var + eps)
    bias = beta - mean * scale
    return scale.astype(jnp.float32), bias.astype(jnp.float32)


def _pick_tile_n(n, m, pos_budget=2048):
    """Images per grid step: amortize per-step overhead for tiny images while keeping >= 2
    grid steps when possible so both v7x TensorCores (and the pipeline) get work."""
    cap = max(1, pos_budget // max(m, 1))
    if n >= 2:
        cap = min(cap, max(1, n // 2))
    best = 1
    for d in range(1, n + 1):
        if n % d == 0 and d <= cap:
            best = d
    return best


def _whole(shape):
    nd = len(shape)
    return pl.BlockSpec(shape, lambda i, _nd=nd: (0,) * _nd)


@functools.partial(jax.jit, static_argnames=("tile_n",))
def residual_block_forward(x_nchw, params, tile_n=None):
    """Forward of Residual_Block.  x_nchw: (N, 2C, H, W) float32, returns the same shape."""
    n, c2, hh, ww = x_nchw.shape
    c = c2 // 2
    cp = ((c + 7) // 8) * 8                 # conv1 channels padded to a sublane multiple
    m = hh * ww
    if tile_n is None:
        tile_n = _pick_tile_n(n, m)
    assert n % tile_n == 0, "tile_n must evenly divide the batch"
    grid = (n // tile_n,)

    # NCHW stays NCHW: flattening (H, W) into one trailing axis is a free, layout-preserving
    # reshape (no HBM traffic).  The kernel works channels-first, so no transposes anywhere.
    x = x_nchw.reshape(n, c2, m).astype(jnp.float32)

    # Fold eval-mode BN into the conv weights in f32, then cast to bf16 for the MXU; the biases
    # stay f32 and are added to the f32 accumulators in-kernel.  conv1's output-channel axis is
    # zero-padded to cp (matching zero columns in the folded 3x3 weight) so every in-kernel
    # reshape/concat stays sublane-aligned.
    s1, b1 = _fold_bn(params["g1"], params["b1"], params["m1"], params["v1"])
    s2, b2 = _fold_bn(params["g2"], params["b2"], params["m2"], params["v2"])

    w1 = params["w1"][:, :, 0, 0] * s1[:, None]                         # (C, 2C) f32
    w1 = jnp.pad(w1, ((0, cp - c), (0, 0))).astype(jnp.bfloat16)        # (Cp, 2C) bf16
    b1 = jnp.pad(b1, (0, cp - c)).reshape(cp, 1)                        # (Cp, 1)  f32

    w2 = jnp.transpose(params["w2"], (0, 2, 3, 1)) * s2[:, None, None, None]   # (2C, 3, 3, C)
    w2 = jnp.pad(w2, ((0, 0), (0, 0), (0, 0), (0, cp - c)))
    w2 = w2.reshape(c2, 9 * cp).astype(jnp.bfloat16)                    # (2C, 9*Cp) bf16
    b2 = b2.reshape(c2, 1)                                              # (2C, 1)   f32

    # Column-within-row index, used for the left/right SAME-padding selects.
    colpos = jnp.tile(jnp.arange(ww, dtype=jnp.int32), hh).reshape(1, m)

    flops = 2 * n * m * (c2 * c + 9 * c * c2)
    bytes_accessed = (2 * n * c2 * m * 4                                # activations in + out
                      + (w1.size + w2.size) * 2                        # resident weights, once
                      + (b1.size + b2.size) * 4 + colpos.size * 4)
    cost = pl.CostEstimate(flops=int(flops), transcendentals=0,
                           bytes_accessed=int(bytes_accessed))

    kernel = functools.partial(_fused_res_block_kernel, row_w=ww)

    out = pl.pallas_call(
        kernel,
        out_shape=jax.ShapeDtypeStruct((n, c2, m), jnp.float32),
        grid_spec=pltpu.PrefetchScalarGridSpec(
            num_scalar_prefetch=0,
            grid=grid,
            in_specs=[
                pl.BlockSpec((tile_n, c2, m), lambda i: (i, 0, 0)),   # activations (NCHW layout)
                _whole((cp, c2)),        # w1  bf16 (BN folded)  -- grid-invariant, fetched once
                _whole((cp, 1)),         # b1  f32
                _whole((c2, 9 * cp)),    # w2  bf16 (BN folded)
                _whole((c2, 1)),         # b2  f32
                _whole((1, m)),          # column index within a row (int32)
            ],
            out_specs=pl.BlockSpec((tile_n, c2, m), lambda i: (i, 0, 0)),
        ),
        compiler_params=pltpu.CompilerParams(
            dimension_semantics=("parallel",),
            vmem_limit_bytes=_VMEM_LIMIT,
        ),
        cost_estimate=cost,
    )(x, w1, b1, w2, b2, colpos)

    return out.reshape(n, c2, hh, ww)


# ------------------------------- reference --------------------------------- #

def _ref_forward(x_nchw, params):
    dn = ("NCHW", "OIHW", "NCHW")
    s1, b1 = _fold_bn(params["g1"], params["b1"], params["m1"], params["v1"])
    s2, b2 = _fold_bn(params["g2"], params["b2"], params["m2"], params["v2"])
    y = lax.conv_general_dilated(x_nchw, params["w1"], (1, 1), "SAME",
                                 dimension_numbers=dn)
    y = y * s1[None, :, None, None] + b1[None, :, None, None]
    y = jnp.where(y > 0, y, 0.1 * y)
    y = lax.conv_general_dilated(y, params["w2"], (1, 1), "SAME",
                                 dimension_numbers=dn)
    y = y * s2[None, :, None, None] + b2[None, :, None, None]
    y = jnp.where(y > 0, y, 0.1 * y)
    return y + x_nchw


def init_params(key, channels):
    c, c2 = channels, 2 * channels
    ks = jax.random.split(key, 10)
    return {
        "w1": 0.1 * jax.random.normal(ks[0], (c, c2, 1, 1), jnp.float32),
        "g1": 1.0 + 0.1 * jax.random.normal(ks[1], (c,), jnp.float32),
        "b1": 0.1 * jax.random.normal(ks[2], (c,), jnp.float32),
        "m1": 0.1 * jax.random.normal(ks[3], (c,), jnp.float32),
        "v1": 1.0 + 0.1 * jax.random.uniform(ks[4], (c,), jnp.float32),
        "w2": 0.1 * jax.random.normal(ks[5], (c2, c, 3, 3), jnp.float32),
        "g2": 1.0 + 0.1 * jax.random.normal(ks[6], (c2,), jnp.float32),
        "b2": 0.1 * jax.random.normal(ks[7], (c2,), jnp.float32),
        "m2": 0.1 * jax.random.normal(ks[8], (c2,), jnp.float32),
        "v2": 1.0 + 0.1 * jax.random.uniform(ks[9], (c2,), jnp.float32),
    }


if __name__ == "__main__":
    key = jax.random.PRNGKey(0)
    channels = 4            # Residual_Block(channels=4) -> input has 2*channels = 8 channels
    n, h, w = 2, 16, 16

    k_x, k_p = jax.random.split(key)
    x = jax.random.normal(k_x, (n, 2 * channels, h, w), jnp.float32)
    params = init_params(k_p, channels)

    ref = jax.block_until_ready(_ref_forward(x, params))

    # default: one image per grid step (2 parallel steps); grouped: both images in one block,
    # exercising the multi-image static unroll inside the kernel.
    out = jax.block_until_ready(residual_block_forward(x, params))
    out_grouped = jax.block_until_ready(residual_block_forward(x, params, tile_n=2))

    assert out.shape == out_grouped.shape == ref.shape == (n, 2 * channels, h, w)
    for o in (out, out_grouped):
        err = float(jnp.max(jnp.abs(o - ref)))
        assert jnp.allclose(o, ref, atol=3e-2, rtol=3e-2), \
            f"mismatch vs reference conv (max|diff|={err})"

    print("KERNEL_OK")
</pallas_src>

<mosaic_0001>
module attributes {stable_mosaic.version = 11 : i64} {
  func.func @_fused_res_block_kernel(%arg0: i32, %arg1: memref<1x8x256xf32, #tpu.memory_space<vmem>>, %arg2: memref<8x8xbf16, #tpu.memory_space<vmem>>, %arg3: memref<8x1xf32, #tpu.memory_space<vmem>>, %arg4: memref<8x72xbf16, #tpu.memory_space<vmem>>, %arg5: memref<8x1xf32, #tpu.memory_space<vmem>>, %arg6: memref<1x256xi32, #tpu.memory_space<vmem>>, %arg7: memref<1x8x256xf32, #tpu.memory_space<vmem>>) attributes {dimension_semantics = [#tpu.dimension_semantics<parallel>], iteration_bounds = array<i64: 2>, scalar_prefetch = 0 : i64, scratch_operands = 0 : i64, tpu.core_type = #tpu.core_type<tc>, window_params = [{transform_indices = @transform_0, window_bounds = array<i64: 1, 8, 256>}, {pipeline_mode = #tpu.pipeline_mode<synchronous>, transform_indices = @transform_1, window_bounds = array<i64: 8, 8>}, {pipeline_mode = #tpu.pipeline_mode<synchronous>, transform_indices = @transform_2, window_bounds = array<i64: 8, 1>}, {pipeline_mode = #tpu.pipeline_mode<synchronous>, transform_indices = @transform_3, window_bounds = array<i64: 8, 72>}, {pipeline_mode = #tpu.pipeline_mode<synchronous>, transform_indices = @transform_4, window_bounds = array<i64: 8, 1>}, {pipeline_mode = #tpu.pipeline_mode<synchronous>, transform_indices = @transform_5, window_bounds = array<i64: 1, 256>}, {transform_indices = @transform_6, window_bounds = array<i64: 1, 8, 256>}]} {
    %c0 = arith.constant 0 : index
    %c0_0 = arith.constant 0 : index
    %0 = vector.load %arg6[%c0, %c0_0] : memref<1x256xi32, #tpu.memory_space<vmem>>, vector<1x256xi32>
    %c0_1 = arith.constant 0 : index
    %c0_2 = arith.constant 0 : index
    %1 = vector.load %arg2[%c0_1, %c0_2] : memref<8x8xbf16, #tpu.memory_space<vmem>>, vector<8x8xbf16>
    %c0_3 = arith.constant 0 : index
    %c0_4 = arith.constant 0 : index
    %2 = vector.load %arg4[%c0_3, %c0_4] : memref<8x72xbf16, #tpu.memory_space<vmem>>, vector<8x72xbf16>
    %c0_5 = arith.constant 0 : index
    %c0_6 = arith.constant 0 : index
    %3 = vector.load %arg3[%c0_5, %c0_6] : memref<8x1xf32, #tpu.memory_space<vmem>>, vector<8x1xf32>
    %c0_7 = arith.constant 0 : index
    %c0_8 = arith.constant 0 : index
    %4 = vector.load %arg5[%c0_7, %c0_8] : memref<8x1xf32, #tpu.memory_space<vmem>>, vector<8x1xf32>
    %c0_9 = arith.constant 0 : index
    %c0_10 = arith.constant 0 : index
    %c0_11 = arith.constant 0 : index
    %5 = vector.load %arg1[%c0_9, %c0_10, %c0_11] : memref<1x8x256xf32, #tpu.memory_space<vmem>>, vector<1x8x256xf32>
    %6 = vector.shape_cast %5 : vector<1x8x256xf32> to vector<8x256xf32>
    %7 = arith.truncf %6 : vector<8x256xf32> to vector<8x256xbf16>
    %cst = arith.constant dense<0.000000e+00> : vector<8x256xf32>
    %8 = tpu.matmul %1, %7, %cst {dimension_numbers = #tpu.dot_dimension_numbers<[1], [0], [0], [1], [0, 0, 1, 1], [], []>} : vector<8x8xbf16>, vector<8x256xbf16>, vector<8x256xf32> -> vector<8x256xf32>
    %9 = vector.broadcast %3 : vector<8x1xf32> to vector<8x256xf32>
    %10 = arith.addf %8, %9 : vector<8x256xf32>
    %cst_12 = arith.constant 1.000000e-01 : f32
    %11 = vector.broadcast %cst_12 : f32 to vector<8x256xf32>
    %12 = arith.mulf %11, %10 : vector<8x256xf32>
    %13 = arith.maximumf %10, %12 : vector<8x256xf32>
    %14 = arith.truncf %13 : vector<8x256xf32> to vector<8x256xbf16>
    %cst_13 = arith.constant 0.000000e+00 : bf16
    %15 = vector.broadcast %cst_13 : bf16 to vector<8x1xbf16>
    %16 = vector.extract_strided_slice %14 {offsets = [0, 0], sizes = [8, 255], strides = [1, 1]} : vector<8x256xbf16> to vector<8x255xbf16>
    %17 = tpu.concatenate %15, %16 in 1 : vector<8x1xbf16>, vector<8x255xbf16> -> vector<8x256xbf16>
    %c0_i32 = arith.constant 0 : i32
    %18 = vector.broadcast %c0_i32 : i32 to vector<1x256xi32>
    %19 = arith.cmpi eq, %0, %18 : vector<1x256xi32>
    %cst_14 = arith.constant 0.000000e+00 : f32
    %20 = arith.truncf %cst_14 : f32 to bf16
    %21 = vector.shape_cast %19 : vector<1x256xi1> to vector<1x256xi1>
    %22 = vector.broadcast %21 : vector<1x256xi1> to vector<8x256xi1>
    %23 = vector.broadcast %20 : bf16 to vector<8x256xbf16>
    %24 = arith.select %22, %23, %17 : vector<8x256xi1>, vector<8x256xbf16>
    %25 = vector.extract_strided_slice %14 {offsets = [0, 1], sizes = [8, 255], strides = [1, 1]} : vector<8x256xbf16> to vector<8x255xbf16>
    %26 = tpu.concatenate %25, %15 in 1 : vector<8x255xbf16>, vector<8x1xbf16> -> vector<8x256xbf16>
    %c15_i32 = arith.constant 15 : i32
    %27 = vector.broadcast %c15_i32 : i32 to vector<1x256xi32>
    %28 = arith.cmpi eq, %0, %27 : vector<1x256xi32>
    %cst_15 = arith.constant 0.000000e+00 : f32
    %29 = arith.truncf %cst_15 : f32 to bf16
    %30 = vector.shape_cast %28 : vector<1x256xi1> to vector<1x256xi1>
    %31 = vector.broadcast %30 : vector<1x256xi1> to vector<8x256xi1>
    %32 = vector.broadcast %29 : bf16 to vector<8x256xbf16>
    %33 = arith.select %31, %32, %26 : vector<8x256xi1>, vector<8x256xbf16>
    %34 = vector.shape_cast %24 : vector<8x256xbf16> to vector<1x8x256xbf16>
    %35 = vector.shape_cast %14 : vector<8x256xbf16> to vector<1x8x256xbf16>
    %36 = vector.shape_cast %33 : vector<8x256xbf16> to vector<1x8x256xbf16>
    %37 = tpu.concatenate %34, %35, %36 in 0 : vector<1x8x256xbf16>, vector<1x8x256xbf16>, vector<1x8x256xbf16> -> vector<3x8x256xbf16>
    %cst_16 = arith.constant 0.000000e+00 : bf16
    %38 = vector.broadcast %cst_16 : bf16 to vector<3x8x16xbf16>
    %39 = vector.extract_strided_slice %37 {offsets = [0, 0, 0], sizes = [3, 8, 240], strides = [1, 1, 1]} : vector<3x8x256xbf16> to vector<3x8x240xbf16>
    %40 = tpu.concatenate %38, %39 in 2 : vector<3x8x16xbf16>, vector<3x8x240xbf16> -> vector<3x8x256xbf16>
    %41 = vector.extract_strided_slice %37 {offsets = [0, 0, 16], sizes = [3, 8, 240], strides = [1, 1, 1]} : vector<3x8x256xbf16> to vector<3x8x240xbf16>
    %42 = tpu.concatenate %41, %38 in 2 : vector<3x8x240xbf16>, vector<3x8x16xbf16> -> vector<3x8x256xbf16>
    %43 = tpu.concatenate %40, %37, %42 in 0 : vector<3x8x256xbf16>, vector<3x8x256xbf16>, vector<3x8x256xbf16> -> vector<9x8x256xbf16>
    %44 = vector.shape_cast %43 : vector<9x8x256xbf16> to vector<72x256xbf16>
    %cst_17 = arith.constant dense<0.000000e+00> : vector<8x256xf32>
    %45 = tpu.matmul %2, %44, %cst_17 {dimension_numbers = #tpu.dot_dimension_numbers<[1], [0], [0], [1], [0, 0, 1, 1], [], []>} : vector<8x72xbf16>, vector<72x256xbf16>, vector<8x256xf32> -> vector<8x256xf32>
    %46 = vector.broadcast %4 : vector<8x1xf32> to vector<8x256xf32>
    %47 = arith.addf %45, %46 : vector<8x256xf32>
    %cst_18 = arith.constant 1.000000e-01 : f32
    %48 = vector.broadcast %cst_18 : f32 to vector<8x256xf32>
    %49 = arith.mulf %48, %47 : vector<8x256xf32>
    %50 = arith.maximumf %47, %49 : vector<8x256xf32>
    %51 = arith.addf %50, %6 : vector<8x256xf32>
    %c0_19 = arith.constant 0 : index
    %c0_20 = arith.constant 0 : index
    %c0_21 = arith.constant 0 : index
    %52 = vector.load %arg7[%c0_19, %c0_20, %c0_21] : memref<1x8x256xf32, #tpu.memory_space<vmem>>, vector<1x8x256xf32>
    %53 = vector.shape_cast %52 : vector<1x8x256xf32> to vector<8x256xf32>
    %54 = vector.shape_cast %51 : vector<8x256xf32> to vector<1x8x256xf32>
    tpu.vector_store %arg7[%c0_19, %c0_20, %c0_21], %54 {strides = array<i32>} : memref<1x8x256xf32, #tpu.memory_space<vmem>>, vector<1x8x256xf32>,
    return
  }
  func.func @transform_0(%arg0: i32) -> (i32, i32, i32) {
    %c0_i32 = arith.constant 0 : i32
    %c0_i32_0 = arith.constant 0 : i32
    %c0_i32_1 = arith.constant 0 : i32
    return %arg0, %c0_i32, %c0_i32_0 : i32, i32, i32
  }
  func.func @transform_1(%arg0: i32) -> (i32, i32) {
    %c0_i32 = arith.constant 0 : i32
    %c0_i32_0 = arith.constant 0 : i32
    %c0_i32_1 = arith.constant 0 : i32
    return %c0_i32, %c0_i32_0 : i32, i32
  }
  func.func @transform_2(%arg0: i32) -> (i32, i32) {
    %c0_i32 = arith.constant 0 : i32
    %c0_i32_0 = arith.constant 0 : i32
    %c0_i32_1 = arith.constant 0 : i32
    return %c0_i32, %c0_i32_0 : i32, i32
  }
  func.func @transform_3(%arg0: i32) -> (i32, i32) {
    %c0_i32 = arith.constant 0 : i32
    %c0_i32_0 = arith.constant 0 : i32
    %c0_i32_1 = arith.constant 0 : i32
    return %c0_i32, %c0_i32_0 : i32, i32
  }
  func.func @transform_4(%arg0: i32) -> (i32, i32) {
    %c0_i32 = arith.constant 0 : i32
    %c0_i32_0 = arith.constant 0 : i32
    %c0_i32_1 = arith.constant 0 : i32
    return %c0_i32, %c0_i32_0 : i32, i32
  }
  func.func @transform_5(%arg0: i32) -> (i32, i32) {
    %c0_i32 = arith.constant 0 : i32
    %c0_i32_0 = arith.constant 0 : i32
    %c0_i32_1 = arith.constant 0 : i32
    return %c0_i32, %c0_i32_0 : i32, i32
  }
  func.func @transform_6(%arg0: i32) -> (i32, i32, i32) {
    %c0_i32 = arith.constant 0 : i32
    %c0_i32_0 = arith.constant 0 : i32
    %c0_i32_1 = arith.constant 0 : i32
    return %arg0, %c0_i32, %c0_i32_0 : i32, i32, i32
  }
}

</mosaic_0001>

<llo_original>
// kernel: tile.9
$region0: #{tile.9}
  %s0 = inlined_call_operand.vmem [shape: s32[16,16], index: 0, kind: input, shape index: {}]
  %s1 = inlined_call_operand.vmem [shape: s32[1,256], index: 1, kind: output, shape index: {}]
  $region1: #{tile.9} parent=0
    #allocation0 [shape = 'u8[8192]{0}', space=vmem, size = 0x2000, scoped, tag = 'scoped mem for output reshape']
    %s2 = smov 3
    %v3 = vld [vmem:[%s0] ss:$8 sm:%s2]
    %vm4 = vcmask 130048
    %5 = vst.msk [vmem:[#allocation0] ss:$8 sm:$0x3] %vm4, %v3
    %s6 = scalar_lea.vmem %s0, 7
    %s7 = smov 3
    %v8 = vld [vmem:[%s6] ss:$8 sm:%s7]
    %9 = vrot.lane.b32.xlu0 %v8, 112
    %v10 = vpop.permute.xlu0 %9
    %vm11 = vcmask 1048448
    %12 = vst.msk [vmem:[#allocation0] ss:$8 sm:$0x3] %vm11, %v10
    %s13 = scalar_lea.vmem %s0, 6
    %s14 = smov 3
    %v15 = vld [vmem:[%s13] ss:$8 sm:%s14]
    %16 = vrot.lane.b32.xlu0 %v15, 96
    %v17 = vpop.permute.xlu0 %16
    %vm18 = vcmask 917248
    %19 = vst.msk [vmem:[#allocation0] ss:$8 sm:$0x3] %vm18, %v17
    %s20 = scalar_lea.vmem %s0, 5
    %s21 = smov 3
    %v22 = vld [vmem:[%s20] ss:$8 sm:%s21]
    %23 = vrot.lane.b32.xlu0 %v22, 80
    %v24 = vpop.permute.xlu0 %23
    %vm25 = vcmask 786048
    %26 = vst.msk [vmem:[#allocation0] ss:$8 sm:$0x3] %vm25, %v24
    %s27 = scalar_lea.vmem %s0, 4
    %s28 = smov 3
    %v29 = vld [vmem:[%s27] ss:$8 sm:%s28]
    %30 = vrot.lane.b32.xlu0 %v29, 64
    %v31 = vpop.permute.xlu0 %30
    %vm32 = vcmask 654848
    %33 = vst.msk [vmem:[#allocation0] ss:$8 sm:$0x3] %vm32, %v31
    %s34 = scalar_lea.vmem %s0, 3
    %s35 = smov 3
    %v36 = vld [vmem:[%s34] ss:$8 sm:%s35]
    %37 = vrot.lane.b32.xlu0 %v36, 48
    %v38 = vpop.permute.xlu0 %37
    %vm39 = vcmask 523648
    %40 = vst.msk [vmem:[#allocation0] ss:$8 sm:$0x3] %vm39, %v38
    %s41 = scalar_lea.vmem %s0, 2
    %s42 = smov 3
    %v43 = vld [vmem:[%s41] ss:$8 sm:%s42]
    %44 = vrot.lane.b32.xlu0 %v43, 32
    %v45 = vpop.permute.xlu0 %44
    %vm46 = vcmask 392448
    %47 = vst.msk [vmem:[#allocation0] ss:$8 sm:$0x3] %vm46, %v45
    %s48 = scalar_lea.vmem %s0, 1
    %s49 = smov 3
    %v50 = vld [vmem:[%s48] ss:$8 sm:%s49]
    %51 = vrot.lane.b32.xlu0 %v50, 16
    %v52 = vpop.permute.xlu0 %51
    %vm53 = vcmask 261248
    %54 = vst.msk [vmem:[#allocation0] ss:$8 sm:$0x3] %vm53, %v52
    %s56 = sshllo.u32 0, 1
    %v58 = vld [vmem:[#allocation0] sm:%s56]
    %s59 = sshllo.u32 0, 1
    %60 = vst [vmem:[%s1] sm:%s59] %v58
    %s61 = scalar_lea.vmem [#allocation0], 8
    %v62 = vld [vmem:[%s61] sm:%s56]
    %s63 = sshllo.u32 0, 1
    %s64 = scalar_lea.vmem %s1, 1
    %65 = vst [vmem:[%s64] sm:%s63] %v62

// kernel: residual_block_forward.1
$region0: #{residual_block_forward.1}
  #allocation0 [shape = 'u32[]', space=smem, size = 0x4, offset = 0x4, fixed_abs, tag = 'smem constant byte address 0x4 - core index']
  #allocation1 [shape = 'u32[144,128]{1,0:T(1,128)}', space=vmem, size = 0x12000, scoped, tag = 'internal scratch']
  %s0 = inlined_call_operand.vmem [shape: f32[2,8,256], index: 0, kind: input, shape index: {}]
  %s1 = inlined_call_operand.vmem [shape: bf16[8,8], index: 1, kind: input, shape index: {}]
  %s2 = inlined_call_operand.vmem [shape: f32[8,1], index: 2, kind: input, shape index: {}]
  %s3 = inlined_call_operand.vmem [shape: bf16[8,72], index: 3, kind: input, shape index: {}]
  %s4 = inlined_call_operand.vmem [shape: f32[8,1], index: 4, kind: input, shape index: {}]
  %s5 = inlined_call_operand.vmem [shape: s32[1,256], index: 5, kind: input, shape index: {}]
  %s6 = inlined_call_operand.vmem [shape: f32[2,8,256], index: 6, kind: output, shape index: {}]
  %s7 = sld [smem:[#allocation0]]
  $region57: #{residual_block_forward.1} parent=0
    _
  %s9 = ssub.s32 1, %s7
  %s10 = scalar_select 0, %s9, %s7
  loop: start=0, step=1, limit=4
  $region2: #{residual_block_forward.1} parent=0 // loop_pre_header
    _
  $region3: #{residual_block_forward.1} parent=0 // loop_header
    %s12 = sphi 0, %s16
    %p13 = scmp.ge.s32.totalorder %s12, 4
    %s22 = sphi 0, %s24
    %s25 = sphi 0, %s22
    %s26 = sphi 0, %s25
    %s42 = sphi 0, %s26
    %s46 = sphi 0, %s46
    %s48 = sphi 0, %s46
    %s49 = sphi 0, %s48
    %s63 = sphi 0, %s49
    %s67 = sphi 0, %s67
    %s69 = sphi 0, %s67
    %s70 = sphi 0, %s69
    %s84 = sphi 0, %s70
    %s88 = sphi 0, %s88
    %s90 = sphi 0, %s88
    %s91 = sphi 0, %s90
    %s105 = sphi 0, %s91
    %s109 = sphi 0, %s109
    %s111 = sphi 0, %s109
    %s112 = sphi 0, %s111
    %s126 = sphi 0, %s112
    %s130 = sphi 0, %s130
    %s132 = sphi 0, %s130
    %s133 = sphi 0, %s132
    %s147 = sphi 0, %s133
    %s153 = sphi 0, %s155
    %s156 = sphi 0, %s153
    %s157 = sphi 0, %s156
    %s173 = sphi 0, %s157
  $region4: #{residual_block_forward.1} parent=0 // loop_header_branch
    %15 = sbr.rel (%p13) target = $region8
  $region5: #{residual_block_forward.1} parent=0 // loop_body
    %s17 = ssub.s32 %s12, 1
    %s18 = ssub.s32 %s12, 2
    %s19 = sadd.s32 %s12, 1
    %s20 = ssub.s32 %s12, %s19
    %p21 = scmp.eq.s32.totalorder %s20, 0
    %s23 = sadd.s32 %s22, 1
    %s24 = scalar_select %p21, %s22, %s23
    %p27 = pneg %p21
    %p28 = scmp.eq.s32.totalorder %s12, 1
    %p29 = por %p27, %p28
    %p30 = scmp.ne.s32.totalorder %s22, %s25
    %p31 = scmp.eq.s32.totalorder %s12, 0
    %p32 = por %p30, %p31
    %p33 = scmp.ne.s32.totalorder %s22, %s25
    %p34 = scmp.eq.s32.totalorder %s17, 1
    %p35 = por %p33, %p34
    %p36 = scmp.ne.s32.totalorder %s25, %s26
    %p37 = scmp.eq.s32.totalorder %s17, 0
    %p38 = por %p36, %p37
    %p39 = scmp.ne.s32.totalorder %s25, %s26
    %p40 = scmp.eq.s32.totalorder %s18, 1
    %p41 = por %p39, %p40
    %p43 = scmp.ne.s32.totalorder %s26, %s42
    %p44 = scmp.eq.s32.totalorder %s18, 0
    %p45 = por %p43, %p44
    %s47 = sadd.s32 %s46, 1
    %p50 = scmp.eq.s32.totalorder %s12, 1
    %p51 = scmp.ne.s32.totalorder %s46, %s48
    %p52 = scmp.eq.s32.totalorder %s12, 0
    %p53 = por %p51, %p52
    %p54 = scmp.ne.s32.totalorder %s46, %s48
    %p55 = scmp.eq.s32.totalorder %s17, 1
    %p56 = por %p54, %p55
    %p57 = scmp.ne.s32.totalorder %s48, %s49
    %p58 = scmp.eq.s32.totalorder %s17, 0
    %p59 = por %p57, %p58
    %p60 = scmp.ne.s32.totalorder %s48, %s49
    %p61 = scmp.eq.s32.totalorder %s18, 1
    %p62 = por %p60, %p61
    %p64 = scmp.ne.s32.totalorder %s49, %s63
    %p65 = scmp.eq.s32.totalorder %s18, 0
    %p66 = por %p64, %p65
    %s68 = sadd.s32 %s67, 1
    %p71 = scmp.eq.s32.totalorder %s12, 1
    %p72 = scmp.ne.s32.totalorder %s67, %s69
    %p73 = scmp.eq.s32.totalorder %s12, 0
    %p74 = por %p72, %p73
    %p75 = scmp.ne.s32.totalorder %s67, %s69
    %p76 = scmp.eq.s32.totalorder %s17, 1
    %p77 = por %p75, %p76
    %p78 = scmp.ne.s32.totalorder %s69, %s70
    %p79 = scmp.eq.s32.totalorder %s17, 0
    %p80 = por %p78, %p79
    %p81 = scmp.ne.s32.totalorder %s69, %s70
    %p82 = scmp.eq.s32.totalorder %s18, 1
    %p83 = por %p81, %p82
    %p85 = scmp.ne.s32.totalorder %s70, %s84
    %p86 = scmp.eq.s32.totalorder %s18, 0
    %p87 = por %p85, %p86
    %s89 = sadd.s32 %s88, 1
    %p92 = scmp.eq.s32.totalorder %s12, 1
    %p93 = scmp.ne.s32.totalorder %s88, %s90
    %p94 = scmp.eq.s32.totalorder %s12, 0
    %p95 = por %p93, %p94
    %p96 = scmp.ne.s32.totalorder %s88, %s90
    %p97 = scmp.eq.s32.totalorder %s17, 1
    %p98 = por %p96, %p97
    %p99 = scmp.ne.s32.totalorder %s90, %s91
    %p100 = scmp.eq.s32.totalorder %s17, 0
    %p101 = por %p99, %p100
    %p102 = scmp.ne.s32.totalorder %s90, %s91
    %p103 = scmp.eq.s32.totalorder %s18, 1
    %p104 = por %p102, %p103
    %p106 = scmp.ne.s32.totalorder %s91, %s105
    %p107 = scmp.eq.s32.totalorder %s18, 0
    %p108 = por %p106, %p107
    %s110 = sadd.s32 %s109, 1
    %p113 = scmp.eq.s32.totalorder %s12, 1
    %p114 = scmp.ne.s32.totalorder %s109, %s111
    %p115 = scmp.eq.s32.totalorder %s12, 0
    %p116 = por %p114, %p115
    %p117 = scmp.ne.s32.totalorder %s109, %s111
    %p118 = scmp.eq.s32.totalorder %s17, 1
    %p119 = por %p117, %p118
    %p120 = scmp.ne.s32.totalorder %s111, %s112
    %p121 = scmp.eq.s32.totalorder %s17, 0
    %p122 = por %p120, %p121
    %p123 = scmp.ne.s32.totalorder %s111, %s112
    %p124 = scmp.eq.s32.totalorder %s18, 1
    %p125 = por %p123, %p124
    %p127 = scmp.ne.s32.totalorder %s112, %s126
    %p128 = scmp.eq.s32.totalorder %s18, 0
    %p129 = por %p127, %p128
    %s131 = sadd.s32 %s130, 1
    %p134 = scmp.eq.s32.totalorder %s12, 1
    %p135 = scmp.ne.s32.totalorder %s130, %s132
    %p136 = scmp.eq.s32.totalorder %s12, 0
    %p137 = por %p135, %p136
    %p138 = scmp.ne.s32.totalorder %s130, %s132
    %p139 = scmp.eq.s32.totalorder %s17, 1
    %p140 = por %p138, %p139
    %p141 = scmp.ne.s32.totalorder %s132, %s133
    %p142 = scmp.eq.s32.totalorder %s17, 0
    %p143 = por %p141, %p142
    %p144 = scmp.ne.s32.totalorder %s132, %s133
    %p145 = scmp.eq.s32.totalorder %s18, 1
    %p146 = por %p144, %p145
    %p148 = scmp.ne.s32.totalorder %s133, %s147
    %p149 = scmp.eq.s32.totalorder %s18, 0
    %p150 = por %p148, %p149
    %s151 = ssub.s32 %s12, %s19
    %p152 = scmp.eq.s32.totalorder %s151, 0
    %s154 = sadd.s32 %s153, 1
    %s155 = scalar_select %p152, %s153, %s154
    %p158 = pneg %p152
    %p159 = scmp.eq.s32.totalorder %s12, 1
    %p160 = por %p158, %p159
    %p161 = scmp.ne.s32.totalorder %s153, %s156
    %p162 = scmp.eq.s32.totalorder %s12, 0
    %p163 = por %p161, %p162
    %p164 = scmp.ne.s32.totalorder %s153, %s156
    %p165 = scmp.eq.s32.totalorder %s17, 1
    %p166 = por %p164, %p165
    %p167 = scmp.ne.s32.totalorder %s156, %s157
    %p168 = scmp.eq.s32.totalorder %s17, 0
    %p169 = por %p167, %p168
    %p170 = scmp.ne.s32.totalorder %s156, %s157
    %p171 = scmp.eq.s32.totalorder %s18, 1
    %p172 = por %p170, %p171
    %p174 = scmp.ne.s32.totalorder %s157, %s173
    %p175 = scmp.eq.s32.totalorder %s18, 0
    %p176 = por %p174, %p175
    %p177 = scmp.le.s32.totalorder 1, %s12
    %p178 = scmp.lt.s32.totalorder %s12, 3
    %p179 = pnand %p177, %p178
    %p180 = pneg %p179
    // Predicated region
    $region9: #{residual_block_forward.1} parent=5 // pred_check
      _
    $region10: #{residual_block_forward.1} parent=5 // pred_check_branch
      %182 = sbr.rel (%p179) target = $region12
    $region11: #{residual_block_forward.1} parent=5 // pred_region
      %s183 = ssub.s32 %s12, 1
      // Predicated region
      $region13: #{residual_block_forward.1} parent=11 // pred_check
        %p184 = pneg %p59
      $region14: #{residual_block_forward.1} parent=11 // pred_check_branch
        %186 = sbr.rel (%p184) target = $region16
      $region15: #{residual_block_forward.1} parent=11 // pred_region
        _
      $region16: #{residual_block_forward.1} parent=11 // pred_fallthru
        _
      // Predicated region
      $region17: #{residual_block_forward.1} parent=11 // pred_check
        %p187 = pneg %p80
      $region18: #{residual_block_forward.1} parent=11 // pred_check_branch
        %189 = sbr.rel (%p187) target = $region20
      $region19: #{residual_block_forward.1} parent=11 // pred_region
        _
      $region20: #{residual_block_forward.1} parent=11 // pred_fallthru
        _
      // Predicated region
      $region21: #{residual_block_forward.1} parent=11 // pred_check
        %p190 = pneg %p101
      $region22: #{residual_block_forward.1} parent=11 // pred_check_branch
        %192 = sbr.rel (%p190) target = $region24
      $region23: #{residual_block_forward.1} parent=11 // pred_region
        _
      $region24: #{residual_block_forward.1} parent=11 // pred_fallthru
        _
      // Predicated region
      $region25: #{residual_block_forward.1} parent=11 // pred_check
        %p193 = pneg %p122
      $region26: #{residual_block_forward.1} parent=11 // pred_check_branch
        %195 = sbr.rel (%p193) target = $region28
      $region27: #{residual_block_forward.1} parent=11 // pred_region
        _
      $region28: #{residual_block_forward.1} parent=11 // pred_fallthru
        _
      // Predicated region
      $region29: #{residual_block_forward.1} parent=11 // pred_check
        %p196 = pneg %p143
      $region30: #{residual_block_forward.1} parent=11 // pred_check_branch
        %198 = sbr.rel (%p196) target = $region32
      $region31: #{residual_block_forward.1} parent=11 // pred_region
        _
      $region32: #{residual_block_forward.1} parent=11 // pred_fallthru
        _
    $region12: #{residual_block_forward.1} parent=5 // pred_fallthru
      _
    %p199 = scmp.lt.s32.totalorder %s12, 2
    // Predicated region
    $region33: #{residual_block_forward.1} parent=5 // pred_check
      %p200 = pneg %p199
    $region34: #{residual_block_forward.1} parent=5 // pred_check_branch
      %202 = sbr.rel (%p200) target = $region36
    $region35: #{residual_block_forward.1} parent=5 // pred_region
      // Predicated region
      $region37: #{residual_block_forward.1} parent=35 // pred_check
        %p203 = pneg %p32
      $region38: #{residual_block_forward.1} parent=35 // pred_check_branch
        %205 = sbr.rel (%p203) target = $region40
      $region39: #{residual_block_forward.1} parent=35 // pred_region
        %p206 = scmp.lt.s32.totalorder %s12, 1
        %s207 = scalar_select %p206, %s12, 1
        %s208 = smul.addr %s207, 2
        %s209 = smul.addr %s208, 8
        %s210 = scalar_lea.vmem %s0, %s209
      $region40: #{residual_block_forward.1} parent=35 // pred_fallthru
        _
    $region36: #{residual_block_forward.1} parent=5 // pred_fallthru
      _
    %p211 = scmp.le.s32.totalorder 1, %s12
    %p212 = scmp.lt.s32.totalorder %s12, 3
    %p213 = pnand %p211, %p212
    %p214 = pneg %p213
    // Predicated region
    $region41: #{residual_block_forward.1} parent=5 // pred_check
      _
    $region42: #{residual_block_forward.1} parent=5 // pred_check_branch
      %216 = sbr.rel (%p213) target = $region44
    $region43: #{residual_block_forward.1} parent=5 // pred_region
      %s217 = ssub.s32 %s12, 1
      %p218 = scmp.lt.s32.totalorder %s17, 1
      %s219 = scalar_select %p218, %s17, 1
      %s220 = smul.addr %s219, 2
      %s221 = smul.addr %s220, 8
      %s222 = scalar_lea.vmem %s0, %s221
      %p223 = pneg %p38
      %p224 = pneg %p35
      %p225 = pneg %p59
      %p226 = pneg %p56
      %p227 = pneg %p80
      %p228 = pneg %p77
      %p229 = pneg %p101
      %p230 = pneg %p98
      %p231 = pneg %p122
      %p232 = pneg %p119
      %p233 = pneg %p143
      %p234 = pneg %p140
      %p235 = pneg %p169
      %p236 = pneg %p166
      %p237 = scmp.lt.s32.totalorder %s17, 1
      %s238 = scalar_select %p237, %s17, 1
      %s239 = smul.addr %s238, 2
      %s240 = smul.addr %s239, 8
      %s241 = scalar_lea.vmem %s6, %s240
      %p242 = scmp.lt.s32.totalorder %s17, 1
      %s243 = scalar_select %p242, %s17, 1
      %s244 = smul.addr %s243, 2
      %s245 = smul.addr %s244, 8
      %s246 = scalar_lea.vmem %s0, %s245
      %p247 = scmp.lt.s32.totalorder %s17, 1
      %s248 = scalar_select %p247, %s17, 1
      %s249 = smul.addr %s248, 2
      %s250 = smul.addr %s249, 8
      %s251 = scalar_lea.vmem %s6, %s250
      %v255 = vld [vmem:[%s5] sm:$0x3]
      %v256 = vld [vmem:[%s1] sm:$0xf]
      %v257 = vld [vmem:[%s3] sm:$0xf]
      %v258 = vld [vmem:[%s2] sm:$0xff]
      %v259 = vld [vmem:[%s4] sm:$0xff]
      %v260 = vld [vmem:[%s246] sm:$0xff]
      %v261 = vld [vmem:[%s246 + $0x8] sm:$0xff]
      %v262 = vpack.c.bf16 %v260, %v260
      %v263 = vpack.c.bf16 %v261, %v261
      %265 = vset.pattern.permute.xlu0 0
      %266 = vperm.xlu0 %265, %v258
      %v267 = vpop.permute.xlu0 %266
      %vm269 = vcmask 64512
      %v271 = vsel %vm269, %v256, 0
      %vm273 = vcmask 1043456
      %v275 = vsel %vm273, %v262, 0
      %v278 = vsel %vm273, %v263, 0
      %280 = vmatprep.subr.bf16.mxu0 %v278
      %281 = vmatpush1.bf16.msra.mxu0 %v275
      %282 = vmatprep.subr.bf16.mxu0 0
      %283 = vmatpush1.bf16.msra.mxu0 0
      %284 = vmatprep.subr.bf16.mxu0 0
      %285 = vmatpush1.bf16.msra.mxu0 0
      %286 = vmatprep.subr.bf16.mxu0 0
      %287 = vmatpush1.bf16.msra.mxu0 0
      %288 = vmatprep.subr.bf16.mxu0 0
      %289 = vmatpush1.bf16.msra.mxu0 0
      %290 = vmatprep.subr.bf16.mxu0 0
      %291 = vmatpush1.bf16.msra.mxu0 0
      %292 = vmatprep.subr.bf16.mxu0 0
      %293 = vmatpush1.bf16.msra.mxu0 0
      %294 = vmatprep.subr.bf16.mxu0 0
      %295 = vmatpush1.bf16.msra.mxu0 0
      %296 = vmatprep.subr.bf16.mxu0 0
      %297 = vmatpush1.bf16.msra.mxu0 0
      %298 = vmatprep.subr.bf16.mxu0 0
      %299 = vmatpush1.bf16.msra.mxu0 0
      %300 = vmatprep.subr.bf16.mxu0 0
      %301 = vmatpush1.bf16.msra.mxu0 0
      %302 = vmatprep.subr.bf16.mxu0 0
      %303 = vmatpush1.bf16.msra.mxu0 0
      %304 = vmatprep.subr.bf16.mxu0 0
      %305 = vmatpush1.bf16.msra.mxu0 0
      %306 = vmatprep.subr.bf16.mxu0 0
      %307 = vmatpush1.bf16.msra.mxu0 0
      %308 = vmatprep.subr.bf16.mxu0 0
      %309 = vmatpush1.bf16.msra.mxu0 0
      %310 = vmatprep.subr.bf16.mxu0 0
      %311 = vmatpush1.bf16.msra.mxu0 0
      %312 = vmatprep.mubr.bf16.mxu0 0
      %313 = vmatmul.mubr.bf16.gmra.mrb[0].mxu0 %v271
      %v314 = vpop.f32.mrb[0].mxu0
      %v315 = vadd.f32 %v267, %v314
      %v316 = vpop.f32.mrb[0].mxu0
      %v317 = vadd.f32 %v267, %v316
      %v318 = vpop.f32.mrb[0].mxu0
      %v319 = vpop.f32.mrb[0].mxu0
      %320 = vdwg.mxu0
      %v321 = vmul.f32 %v315, 0.1
      %v322 = vmul.f32 %v317, 0.1
      %v323 = vmax.f32 %v315, %v321
      %v324 = vmax.f32 %v317, %v322
      %v325 = vpack.c.bf16 %v323, %v323
      %v326 = vpack.c.bf16 %v324, %v324
      %329 = vrot.lane.b32.xlu0 %v325, 1
      %v330 = vpop.permute.xlu0 %329
      %331 = vrot.lane.b32.xlu0 %v326, 1
      %v332 = vpop.permute.xlu0 %331
      %vm333 = vcmask 7168
      %v334 = vsel %vm333, %v330, %v332
      %vm336 = vcmask 7168
      %v339 = vsel %vm336, 0, %v330
      %vm341 = vcmp.eq.s32.totalorder %v255, 0
      %v342 = vsel %vm341, 1, 0
      %v343 = vlaneseq
      %v344 = vshrl.u32 %v343, 7
      %v345 = vsub.s32 0, %v344
      %v346 = vrot.slane %v342, %v345
      %v347 = vlaneseq
      %v348 = vshrl.u32 %v347, 7
      %v349 = vsub.s32 1, %v348
      %v350 = vrot.slane %v342, %v349
      %vm351 = vcmp.eq.s32.totalorder %v346, 1
      %vm352 = vcmp.eq.s32.totalorder %v350, 1
      %vm353 = vmpackc.low %vm352, %vm351
      %v354 = vsel %vm353, 65537, 0
      %v355 = vlaneseq
      %v356 = vshrl.u32 %v355, 7
      %v357 = vsub.s32 0, %v356
      %v358 = vrot.slane %v354, %v357
      %v359 = vlaneseq
      %v360 = vshrl.u32 %v359, 7
      %v361 = vsub.s32 4, %v360
      %v362 = vrot.slane %v354, %v361
      %vm363 = vcmp.ne.s16.totalorder %v358, 0
      %vm364 = vcmp.ne.s16.totalorder %v362, 0
      %v365 = vsel %vm363, 0, %v339
      %v366 = vsel %vm364, 0, %v334
      %367 = vrot.lane.b32.xlu0 %v325, 127
      %v368 = vpop.permute.xlu0 %367
      %369 = vrot.lane.b32.xlu0 %v326, 127
      %v370 = vpop.permute.xlu0 %369
      %vm371 = vcmask 1039360
      %v372 = vsel %vm371, %v368, %v370
      %vm374 = vcmask 1039360
      %v376 = vsel %vm374, %v370, 0
      %vm378 = vcmp.eq.s32.totalorder %v255, 15
      %v379 = vsel %vm378, 1, 0
      %v380 = vlaneseq
      %v381 = vshrl.u32 %v380, 7
      %v382 = vsub.s32 0, %v381
      %v383 = vrot.slane %v379, %v382
      %v384 = vlaneseq
      %v385 = vshrl.u32 %v384, 7
      %v386 = vsub.s32 1, %v385
      %v387 = vrot.slane %v379, %v386
      %vm388 = vcmp.eq.s32.totalorder %v383, 1
      %vm389 = vcmp.eq.s32.totalorder %v387, 1
      %vm390 = vmpackc.low %vm389, %vm388
      %v391 = vsel %vm390, 65537, 0
      %v392 = vlaneseq
      %v393 = vshrl.u32 %v392, 7
      %v394 = vsub.s32 0, %v393
      %v395 = vrot.slane %v391, %v394
      %v396 = vlaneseq
      %v397 = vshrl.u32 %v396, 7
      %v398 = vsub.s32 4, %v397
      %v399 = vrot.slane %v391, %v398
      %vm400 = vcmp.ne.s16.totalorder %v395, 0
      %vm401 = vcmp.ne.s16.totalorder %v399, 0
      %v402 = vsel %vm400, 0, %v372
      %v403 = vsel %vm401, 0, %v376
      %408 = vrot.lane.b32.xlu0 %v365, 16
      %v409 = vpop.permute.xlu0 %408
      %410 = vrot.lane.b32.xlu0 %v366, 16
      %v411 = vpop.permute.xlu0 %410
      %412 = vrot.lane.b32.xlu0 %v325, 16
      %v413 = vpop.permute.xlu0 %412
      %414 = vrot.lane.b32.xlu0 %v326, 16
      %v415 = vpop.permute.xlu0 %414
      %416 = vrot.lane.b32.xlu0 %v402, 16
      %v417 = vpop.permute.xlu0 %416
      %418 = vrot.lane.b32.xlu0 %v403, 16
      %v419 = vpop.permute.xlu0 %418
      %vm420 = vcmask 130048
      %v421 = vsel %vm420, %v409, %v411
      %v422 = vsel %vm420, %v413, %v415
      %v423 = vsel %vm420, %v417, %v419
      %vm424 = vcmask 130048
      %v426 = vsel %vm424, 0, %v409
      %v428 = vsel %vm424, 0, %v413
      %v430 = vsel %vm424, 0, %v417
      %431 = vrot.lane.b32.xlu0 %v365, 112
      %v432 = vpop.permute.xlu0 %431
      %433 = vrot.lane.b32.xlu0 %v366, 112
      %v434 = vpop.permute.xlu0 %433
      %435 = vrot.lane.b32.xlu0 %v325, 112
      %v436 = vpop.permute.xlu0 %435
      %437 = vrot.lane.b32.xlu0 %v326, 112
      %v438 = vpop.permute.xlu0 %437
      %439 = vrot.lane.b32.xlu0 %v402, 112
      %v440 = vpop.permute.xlu0 %439
      %441 = vrot.lane.b32.xlu0 %v403, 112
      %v442 = vpop.permute.xlu0 %441
      %vm443 = vcmask 916480
      %v444 = vsel %vm443, %v432, %v434
      %v445 = vsel %vm443, %v436, %v438
      %v446 = vsel %vm443, %v440, %v442
      %vm447 = vcmask 916480
      %v449 = vsel %vm447, %v434, 0
      %v451 = vsel %vm447, %v438, 0
      %v453 = vsel %vm447, %v442, 0
      %v460 = vunpack.c.l.b16 %v426
      %v461 = vunpack.c.l.b16 %v421
      %v462 = vunpack.c.l.b16 %v428
      %v463 = vunpack.c.l.b16 %v422
      %v464 = vunpack.c.l.b16 %v430
      %v465 = vunpack.c.l.b16 %v423
      %v466 = vunpack.c.l.b16 %v365
      %v467 = vunpack.c.l.b16 %v366
      %v468 = vunpack.c.l.b16 %v325
      %v469 = vunpack.c.l.b16 %v326
      %v470 = vunpack.c.l.b16 %v402
      %v471 = vunpack.c.l.b16 %v403
      %v472 = vunpack.c.l.b16 %v444
      %v473 = vunpack.c.l.b16 %v449
      %v474 = vunpack.c.l.b16 %v445
      %v475 = vunpack.c.l.b16 %v451
      %v476 = vunpack.c.l.b16 %v446
      %v477 = vunpack.c.l.b16 %v453
      %479 = vset.pattern.permute.xlu0 0
      %480 = vperm.xlu0 %479, %v259
      %v481 = vpop.permute.xlu0 %480
      %v483 = vpack.c.b16 %v462, %v460
      %v484 = vpack.c.b16 %v463, %v461
      %v485 = vpack.c.b16 %v466, %v464
      %v486 = vpack.c.b16 %v467, %v465
      %v487 = vpack.c.b16 %v470, %v468
      %v488 = vpack.c.b16 %v471, %v469
      %v489 = vpack.c.b16 %v474, %v472
      %v490 = vpack.c.b16 %v475, %v473
      %v491 = vpack.c.b16 %v476, %v476
      %v492 = vpack.c.b16 %v477, %v477
      %vm501 = vcmask 588800
      %v503 = vsel %vm501, %v257, 0
      %v506 = vsel %vm273, %v491, 0
      %v509 = vsel %vm273, %v492, 0
      %511 = vmatprep.subr.bf16.mxu0 %v484
      %512 = vmatpush1.bf16.msra.mxu0 %v483
      %513 = vmatprep.subr.bf16.mxu0 %v486
      %514 = vmatpush1.bf16.msra.mxu0 %v485
      %515 = vmatprep.subr.bf16.mxu0 %v488
      %516 = vmatpush1.bf16.msra.mxu0 %v487
      %517 = vmatprep.subr.bf16.mxu0 %v490
      %518 = vmatpush1.bf16.msra.mxu0 %v489
      %519 = vmatprep.subr.bf16.mxu0 %v509
      %520 = vmatpush1.bf16.msra.mxu0 %v506
      %521 = vmatprep.subr.bf16.mxu0 0
      %522 = vmatpush1.bf16.msra.mxu0 0
      %523 = vmatprep.subr.bf16.mxu0 0
      %524 = vmatpush1.bf16.msra.mxu0 0
      %525 = vmatprep.subr.bf16.mxu0 0
      %526 = vmatpush1.bf16.msra.mxu0 0
      %527 = vmatprep.subr.bf16.mxu0 0
      %528 = vmatpush1.bf16.msra.mxu0 0
      %529 = vmatprep.subr.bf16.mxu0 0
      %530 = vmatpush1.bf16.msra.mxu0 0
      %531 = vmatprep.subr.bf16.mxu0 0
      %532 = vmatpush1.bf16.msra.mxu0 0
      %533 = vmatprep.subr.bf16.mxu0 0
      %534 = vmatpush1.bf16.msra.mxu0 0
      %535 = vmatprep.subr.bf16.mxu0 0
      %536 = vmatpush1.bf16.msra.mxu0 0
      %537 = vmatprep.subr.bf16.mxu0 0
      %538 = vmatpush1.bf16.msra.mxu0 0
      %539 = vmatprep.subr.bf16.mxu0 0
      %540 = vmatpush1.bf16.msra.mxu0 0
      %541 = vmatprep.subr.bf16.mxu0 0
      %542 = vmatpush1.bf16.msra.mxu0 0
      %543 = vmatprep.mubr.bf16.mxu0 0
      %544 = vmatmul.mubr.bf16.gmra.mrb[0].mxu0 %v503
      %v545 = vpop.f32.mrb[0].mxu0
      %v546 = vadd.f32 %v481, %v545
      %v547 = vpop.f32.mrb[0].mxu0
      %v548 = vadd.f32 %v481, %v547
      %v549 = vpop.f32.mrb[0].mxu0
      %v550 = vpop.f32.mrb[0].mxu0
      %551 = vdwg.mxu0
      %v552 = vmul.f32 %v546, 0.1
      %v553 = vmul.f32 %v548, 0.1
      %v554 = vmax.f32 %v546, %v552
      %v555 = vmax.f32 %v548, %v553
      %v556 = vadd.f32 %v554, %v260
      %v557 = vadd.f32 %v555, %v261
      %558 = vst [vmem:[%s251] sm:$0xff] %v556
      %559 = vst [vmem:[%s251 + $0x8] sm:$0xff] %v557
      %p560 = scmp.lt.s32.totalorder %s17, 1
      %s561 = scalar_select %p560, %s17, 1
      %s562 = smul.addr %s561, 2
      %s563 = smul.addr %s562, 8
      %s564 = scalar_lea.vmem %s6, %s563
      // Predicated region
      $region45: #{residual_block_forward.1} parent=43 // pred_check
        %p565 = pneg %p166
      $region46: #{residual_block_forward.1} parent=43 // pred_check_branch
        %567 = sbr.rel (%p565) target = $region48
      $region47: #{residual_block_forward.1} parent=43 // pred_region
        _
      $region48: #{residual_block_forward.1} parent=43 // pred_fallthru
        _
    $region44: #{residual_block_forward.1} parent=5 // pred_fallthru
      _
    %p568 = scmp.le.s32.totalorder 2, %s12
    // Predicated region
    $region49: #{residual_block_forward.1} parent=5 // pred_check
      %p569 = pneg %p568
    $region50: #{residual_block_forward.1} parent=5 // pred_check_branch
      %571 = sbr.rel (%p569) target = $region52
    $region51: #{residual_block_forward.1} parent=5 // pred_region
      %s572 = ssub.s32 %s12, 2
      // Predicated region
      $region53: #{residual_block_forward.1} parent=51 // pred_check
        %p573 = pneg %p172
      $region54: #{residual_block_forward.1} parent=51 // pred_check_branch
        %575 = sbr.rel (%p573) target = $region56
      $region55: #{residual_block_forward.1} parent=51 // pred_region
        %p576 = scmp.lt.s32.totalorder %s18, 1
        %s577 = scalar_select %p576, %s18, 1
        %s578 = smul.addr %s577, 2
        %s579 = smul.addr %s578, 8
        %s580 = scalar_lea.vmem %s6, %s579
      $region56: #{residual_block_forward.1} parent=51 // pred_fallthru
        _
    $region52: #{residual_block_forward.1} parent=5 // pred_fallthru
      _
  $region6: #{residual_block_forward.1} parent=0 // loop_footer
    %s16 = sadd.s32 1, %s12
  $region7: #{residual_block_forward.1} parent=0 // loop_footer_branch
    %11 = sbr.rel target = $region3
  $region8: #{residual_block_forward.1} parent=0 // loop_exit
    _

</llo_original>
